<compile_context>
chip_gen: v6e
topology: v6e:2x2x1
jax: 0.10.0
libtpu: 0.0.40
codegen_flags: <defaults>
</compile_context>

<pallas_src>
import functools

import jax
import jax.numpy as jnp
from jax.experimental import pallas as pl
from jax.experimental.pallas import tpu as pltpu


# ---------------------------------------------------------------------------
# helpers
# ---------------------------------------------------------------------------

def _pick_tile(dim, target, align):
    """Largest layout-legal tile <= target that divides dim (or dim itself)."""
    if dim <= target:
        return dim
    t = (target // align) * align
    while t >= align:
        if dim % t == 0:
            return t
        t -= align
    return dim  # untiled along this axis (full dim is always layout-legal)


def _largest_divisor(n, cap):
    cap = max(1, min(n, cap))
    for d in range(cap, 0, -1):
        if n % d == 0:
            return d
    return 1


# ---------------------------------------------------------------------------
# Tiled matmul kernel (used for all linear projections)
# ---------------------------------------------------------------------------

def _matmul_kernel(x_ref, w_ref, o_ref, acc_ref, *, compute_dtype):
    @pl.when(pl.program_id(2) == 0)
    def _init():
        acc_ref[...] = jnp.zeros(acc_ref.shape, acc_ref.dtype)

    acc_ref[...] += jnp.dot(
        x_ref[...].astype(compute_dtype),
        w_ref[...].astype(compute_dtype),
        preferred_element_type=jnp.float32,
    )

    @pl.when(pl.program_id(2) == pl.num_programs(2) - 1)
    def _finalize():
        o_ref[...] = acc_ref[...].astype(o_ref.dtype)


def matmul(x, w, *, compute_dtype=jnp.bfloat16,
           m_block=256, n_block=256, k_block=512):
    """x: (M, K), w: (K, N) -> (M, N); bf16/f32 operands, f32 accumulation."""
    M, K = x.shape
    K2, N = w.shape
    assert K == K2
    tm = _pick_tile(M, m_block, 8)
    tn = _pick_tile(N, n_block, 128)
    tk = _pick_tile(K, k_block, 128)
    grid = (M // tm, N // tn, K // tk)

    itemsize = jnp.dtype(x.dtype).itemsize
    blk_bytes = 2 * itemsize * (tm * tk + tk * tn + tm * tn)  # double-buffered
    vmem_limit = int(max(2 * (blk_bytes + 4 * tm * tn), 32 * 1024 * 1024))

    kernel = functools.partial(_matmul_kernel, compute_dtype=compute_dtype)
    return pl.pallas_call(
        kernel,
        out_shape=jax.ShapeDtypeStruct((M, N), x.dtype),
        grid_spec=pltpu.PrefetchScalarGridSpec(
            num_scalar_prefetch=0,
            grid=grid,
            in_specs=[
                pl.BlockSpec((tm, tk), lambda i, j, kb: (i, kb)),
                pl.BlockSpec((tk, tn), lambda i, j, kb: (kb, j)),
            ],
            out_specs=pl.BlockSpec((tm, tn), lambda i, j, kb: (i, j)),
            scratch_shapes=[pltpu.VMEM((tm, tn), jnp.float32)],
        ),
        compiler_params=pltpu.CompilerParams(
            dimension_semantics=("parallel", "parallel", "arbitrary"),
            vmem_limit_bytes=vmem_limit,
        ),
    )(x, w)


# ---------------------------------------------------------------------------
# Flash-style multi-head attention kernel (online softmax, head-blocked)
# ---------------------------------------------------------------------------

def _flash_attention_kernel(q_ref, k_ref, v_ref, o_ref, m_ref, l_ref, acc_ref,
                            *, compute_dtype):
    # TODO(synk): mask / attn_bias / causal masking / dropout paths of the
    # original module are not implemented (inference defaults only).
    ki = pl.program_id(2)

    @pl.when(ki == 0)
    def _init():
        m_ref[...] = jnp.full(m_ref.shape, -jnp.inf, m_ref.dtype)
        l_ref[...] = jnp.zeros(l_ref.shape, l_ref.dtype)
        acc_ref[...] = jnp.zeros(acc_ref.shape, acc_ref.dtype)

    q = q_ref[...].astype(compute_dtype)                      # (hb, tq, D)
    k = k_ref[...].astype(compute_dtype)                      # (hb, tk, D)
    s = jnp.einsum("hqd,hkd->hqk", q, k,
                   preferred_element_type=jnp.float32)        # (hb, tq, tk)

    m_prev = m_ref[...]                                       # (hb, tq, 1)
    m_new = jnp.maximum(m_prev, jnp.max(s, axis=-1, keepdims=True))
    alpha = jnp.exp(m_prev - m_new)
    p = jnp.exp(s - m_new)                                    # f32
    l_ref[...] = alpha * l_ref[...] + jnp.sum(p, axis=-1, keepdims=True)
    pv = jnp.einsum("hqk,hkd->hqd",
                    p.astype(compute_dtype),
                    v_ref[...].astype(compute_dtype),
                    preferred_element_type=jnp.float32)       # (hb, tq, D)
    acc_ref[...] = alpha * acc_ref[...] + pv
    m_ref[...] = m_new

    @pl.when(ki == pl.num_programs(2) - 1)
    def _finalize():
        inv_l = pl.reciprocal(l_ref[...], approx=True)
        o_ref[...] = (acc_ref[...] * inv_l).astype(o_ref.dtype)


def flash_attention(q, k, v, *, compute_dtype=jnp.bfloat16,
                    q_block=128, k_block=128, head_block=None):
    """q: (BH, Nq, D), k/v: (BH, Nk, D) -> (BH, Nq, D).

    softmax(q @ k^T) @ v per head; the scale is assumed already folded into q
    (or into the Q projection weight).
    """
    BH, Nq, D = q.shape
    _, Nk, _ = k.shape
    tq = _pick_tile(Nq, q_block, 8)
    tk = _pick_tile(Nk, k_block, 8)
    if head_block is None:
        head_block = _largest_divisor(BH, max(1, 512 // D))
    hb = head_block
    assert BH % hb == 0 and Nq % tq == 0 and Nk % tk == 0

    grid = (BH // hb, Nq // tq, Nk // tk)

    itemsize = jnp.dtype(q.dtype).itemsize
    blk_bytes = 2 * itemsize * (2 * hb * tq * D + 2 * hb * tk * D)
    scr_bytes = 4 * hb * tq * (D + 2) + 3 * 4 * hb * tq * tk
    vmem_limit = int(max(2 * (blk_bytes + scr_bytes), 32 * 1024 * 1024))

    kernel = functools.partial(_flash_attention_kernel,
                               compute_dtype=compute_dtype)
    return pl.pallas_call(
        kernel,
        out_shape=jax.ShapeDtypeStruct((BH, Nq, D), q.dtype),
        grid_spec=pltpu.PrefetchScalarGridSpec(
            num_scalar_prefetch=0,
            grid=grid,
            in_specs=[
                pl.BlockSpec((hb, tq, D), lambda h, qi, ki: (h, qi, 0)),
                pl.BlockSpec((hb, tk, D), lambda h, qi, ki: (h, ki, 0)),
                pl.BlockSpec((hb, tk, D), lambda h, qi, ki: (h, ki, 0)),
            ],
            out_specs=pl.BlockSpec((hb, tq, D), lambda h, qi, ki: (h, qi, 0)),
            scratch_shapes=[
                pltpu.VMEM((hb, tq, 1), jnp.float32),   # running max
                pltpu.VMEM((hb, tq, 1), jnp.float32),   # running sum
                pltpu.VMEM((hb, tq, D), jnp.float32),   # output accumulator
            ],
        ),
        compiler_params=pltpu.CompilerParams(
            dimension_semantics=("parallel", "parallel", "arbitrary"),
            vmem_limit_bytes=vmem_limit,
        ),
    )(q, k, v)


# ---------------------------------------------------------------------------
# Module wrapper
# ---------------------------------------------------------------------------

class AttentionPallas:
    """Pallas TPU port of navsim Attention forward (no mask/bias, non-causal)."""

    def __init__(self, *, dim, heads=8, dim_head=64, dropout=0.0, causal=False,
                 use_bf16_matmul=True, key=None):
        assert not causal  # TODO(synk): causal path not implemented
        self.dim = dim
        self.heads = heads
        self.dim_head = dim_head
        self.inner_dim = heads * dim_head
        self.compute_dtype = jnp.bfloat16 if use_bf16_matmul else jnp.float32

        key = key if key is not None else jax.random.PRNGKey(0)
        kq, kk, kv, ko = jax.random.split(key, 4)
        inner = self.inner_dim
        wq = jax.random.normal(kq, (dim, inner), jnp.float32) * (dim ** -0.5)
        wk = jax.random.normal(kk, (dim, inner), jnp.float32) * (dim ** -0.5)
        wv = jax.random.normal(kv, (dim, inner), jnp.float32) * (dim ** -0.5)
        wo = jax.random.normal(ko, (inner, dim), jnp.float32) * (inner ** -0.5)

        # Fold the 1/sqrt(dim_head) attention scale into the Q weight (free).
        self.w_q = wq * (dim_head ** -0.5)
        self.w_k = wk
        self.w_v = wv
        self.w_o = wo
        self.w_qkv = jnp.concatenate([self.w_q, wk, wv], axis=1)  # (dim, 3*inner)
        self.w_kv = jnp.concatenate([wk, wv], axis=1)             # (dim, 2*inner)

    def __call__(self, q, k, v):
        B, Nq, _ = q.shape
        _, Nk, _ = k.shape
        H, D, inner = self.heads, self.dim_head, self.inner_dim
        cd = self.compute_dtype

        qf = q.reshape(B * Nq, self.dim)
        kf = k.reshape(B * Nk, self.dim)
        vf = v.reshape(B * Nk, self.dim)

        # Fused projections: read the activation from HBM once when possible.
        if (q is k) and (k is v):
            qkv = matmul(qf, self.w_qkv, compute_dtype=cd)        # (B*N, 3*inner)
            qp = qkv[:, :inner]
            kp = qkv[:, inner:2 * inner]
            vp = qkv[:, 2 * inner:]
        elif k is v:
            qp = matmul(qf, self.w_q, compute_dtype=cd)
            kvp = matmul(kf, self.w_kv, compute_dtype=cd)
            kp, vp = kvp[:, :inner], kvp[:, inner:]
        else:
            qp = matmul(qf, self.w_q, compute_dtype=cd)
            kp = matmul(kf, self.w_k, compute_dtype=cd)
            vp = matmul(vf, self.w_v, compute_dtype=cd)

        # 'b n (h d) -> (b h) n d' : XLA layout plumbing between pallas calls.
        def split_heads(t, N):
            return t.reshape(B, N, H, D).transpose(0, 2, 1, 3).reshape(B * H, N, D)

        oh = flash_attention(split_heads(qp, Nq), split_heads(kp, Nk),
                             split_heads(vp, Nk), compute_dtype=cd)  # (B*H, Nq, D)

        # '(b h) n d -> b n (h d)'
        o = oh.reshape(B, H, Nq, D).transpose(0, 2, 1, 3).reshape(B * Nq, inner)
        out = matmul(o, self.w_o, compute_dtype=cd)
        return out.reshape(B, Nq, self.dim)


# ---------------------------------------------------------------------------
# Plain-JAX references
# ---------------------------------------------------------------------------

def reference_forward(mod, q, k, v, *, mirror_kernel_precision=True):
    """With mirror_kernel_precision=True, matmul operands are cast to the
    kernel's compute dtype (tight comparison); False gives a pure-f32
    reference (loose comparison)."""
    cd = mod.compute_dtype if mirror_kernel_precision else jnp.float32
    B, Nq, _ = q.shape
    Nk = k.shape[1]
    H, D = mod.heads, mod.dim_head

    def mm(x, w):
        return jnp.einsum("mk,kn->mn", x.astype(cd), w.astype(cd),
                          preferred_element_type=jnp.float32)

    qp = mm(q.reshape(B * Nq, mod.dim), mod.w_q).reshape(B, Nq, H, D).transpose(0, 2, 1, 3)
    kp = mm(k.reshape(B * Nk, mod.dim), mod.w_k).reshape(B, Nk, H, D).transpose(0, 2, 1, 3)
    vp = mm(v.reshape(B * Nk, mod.dim), mod.w_v).reshape(B, Nk, H, D).transpose(0, 2, 1, 3)

    s = jnp.einsum("bhid,bhjd->bhij", qp.astype(cd), kp.astype(cd),
                   preferred_element_type=jnp.float32)
    s = s - jnp.max(s, axis=-1, keepdims=True)
    p = jnp.exp(s)
    denom = jnp.sum(p, axis=-1, keepdims=True)
    o = jnp.einsum("bhij,bhjd->bhid", p.astype(cd), vp.astype(cd),
                   preferred_element_type=jnp.float32) / denom
    o = o.transpose(0, 2, 1, 3).reshape(B * Nq, H * D)
    return mm(o, mod.w_o).reshape(B, Nq, mod.dim)


# ---------------------------------------------------------------------------

if __name__ == "__main__":
    key = jax.random.PRNGKey(0)
    k_params, k_x, k_q, k_k, k_v = jax.random.split(key, 5)

    B, N, dim = 2, 8, 32
    heads, dim_head = 4, 16

    mod = AttentionPallas(dim=dim, heads=heads, dim_head=dim_head, key=k_params)

    # Case 1: self-attention (q is k is v) -> exercises the fused QKV path.
    x = jax.random.normal(k_x, (B, N, dim), jnp.float32)
    out_self = jax.block_until_ready(mod(x, x, x))
    assert out_self.shape == (B, N, dim)
    ref_self = reference_forward(mod, x, x, x)
    err_self = float(jnp.max(jnp.abs(out_self - ref_self)))
    assert jnp.allclose(out_self, ref_self, atol=1e-2, rtol=1e-2), (
        f"self-attention mismatch vs mirrored reference: max abs err {err_self}")

    # Case 2: distinct q / k / v -> separate projection path.
    q_in = jax.random.normal(k_q, (B, N, dim), jnp.float32)
    k_in = jax.random.normal(k_k, (B, N, dim), jnp.float32)
    v_in = jax.random.normal(k_v, (B, N, dim), jnp.float32)
    out_cross = jax.block_until_ready(mod(q_in, k_in, v_in))
    ref_cross = reference_forward(mod, q_in, k_in, v_in)
    err_cross = float(jnp.max(jnp.abs(out_cross - ref_cross)))
    assert jnp.allclose(out_cross, ref_cross, atol=1e-2, rtol=1e-2), (
        f"cross-attention mismatch vs mirrored reference: max abs err {err_cross}")

    # Loose sanity check against a pure-f32 reference (bf16 MXU operands add
    # ~1% relative error; overall semantics must still match).
    ref_f32 = reference_forward(mod, q_in, k_in, v_in,
                                mirror_kernel_precision=False)
    err_f32 = float(jnp.max(jnp.abs(out_cross - ref_f32)))
    assert jnp.allclose(out_cross, ref_f32, atol=1e-1, rtol=1e-1), (
        f"mismatch vs f32 reference: max abs err {err_f32}")

    print("KERNEL_OK")
</pallas_src>

<mosaic_0001>
module attributes {stable_mosaic.version = 11 : i64} {
  func.func @_matmul_kernel(%arg0: i32, %arg1: i32, %arg2: i32, %arg3: memref<16x32xf32, #tpu.memory_space<vmem>>, %arg4: memref<32x192xf32, #tpu.memory_space<vmem>>, %arg5: memref<16x192xf32, #tpu.memory_space<vmem>>, %arg6: memref<16x192xf32, #tpu.memory_space<vmem>>) attributes {dimension_semantics = [#tpu.dimension_semantics<parallel>, #tpu.dimension_semantics<parallel>, #tpu.dimension_semantics<arbitrary>], iteration_bounds = array<i64: 1, 1, 1>, scalar_prefetch = 0 : i64, scratch_operands = 1 : i64, tpu.core_type = #tpu.core_type<tc>, window_params = [{transform_indices = @transform_0, window_bounds = array<i64: 16, 32>}, {transform_indices = @transform_1, window_bounds = array<i64: 32, 192>}, {transform_indices = @transform_2, window_bounds = array<i64: 16, 192>}]} {
    %c0_i32 = arith.constant 0 : i32
    %0 = arith.cmpi eq, %arg2, %c0_i32 : i32
    %1 = arith.extui %0 : i1 to i32
    %c0_i32_0 = arith.constant 0 : i32
    %2 = arith.cmpi ne, %1, %c0_i32_0 : i32
    scf.if %2 {
      %cst_10 = arith.constant 0.000000e+00 : f32
      %14 = vector.broadcast %cst_10 : f32 to vector<16x192xf32>
      %c0_11 = arith.constant 0 : index
      %c0_12 = arith.constant 0 : index
      %15 = vector.load %arg6[%c0_11, %c0_12] : memref<16x192xf32, #tpu.memory_space<vmem>>, vector<16x192xf32>
      tpu.vector_store %arg6[%c0_11, %c0_12], %14 {strides = array<i32>} : memref<16x192xf32, #tpu.memory_space<vmem>>, vector<16x192xf32>,
    } else {
    }
    %c0 = arith.constant 0 : index
    %c0_1 = arith.constant 0 : index
    %3 = vector.load %arg6[%c0, %c0_1] : memref<16x192xf32, #tpu.memory_space<vmem>>, vector<16x192xf32>
    %c0_2 = arith.constant 0 : index
    %c0_3 = arith.constant 0 : index
    %4 = vector.load %arg3[%c0_2, %c0_3] : memref<16x32xf32, #tpu.memory_space<vmem>>, vector<16x32xf32>
    %5 = arith.truncf %4 : vector<16x32xf32> to vector<16x32xbf16>
    %c0_4 = arith.constant 0 : index
    %c0_5 = arith.constant 0 : index
    %6 = vector.load %arg4[%c0_4, %c0_5] : memref<32x192xf32, #tpu.memory_space<vmem>>, vector<32x192xf32>
    %7 = arith.truncf %6 : vector<32x192xf32> to vector<32x192xbf16>
    %cst = arith.constant dense<0.000000e+00> : vector<16x192xf32>
    %8 = tpu.matmul %5, %7, %cst {dimension_numbers = #tpu.dot_dimension_numbers<[1], [0], [0], [1], [0, 0, 1, 1], [], []>} : vector<16x32xbf16>, vector<32x192xbf16>, vector<16x192xf32> -> vector<16x192xf32>
    %9 = arith.addf %3, %8 : vector<16x192xf32>
    %c0_6 = arith.constant 0 : index
    %c0_7 = arith.constant 0 : index
    %10 = vector.load %arg6[%c0_6, %c0_7] : memref<16x192xf32, #tpu.memory_space<vmem>>, vector<16x192xf32>
    tpu.vector_store %arg6[%c0_6, %c0_7], %9 {strides = array<i32>} : memref<16x192xf32, #tpu.memory_space<vmem>>, vector<16x192xf32>,
    %c0_i32_8 = arith.constant 0 : i32
    %11 = arith.cmpi eq, %arg2, %c0_i32_8 : i32
    %12 = arith.extui %11 : i1 to i32
    %c0_i32_9 = arith.constant 0 : i32
    %13 = arith.cmpi ne, %12, %c0_i32_9 : i32
    scf.if %13 {
      %c0_10 = arith.constant 0 : index
      %c0_11 = arith.constant 0 : index
      %14 = vector.load %arg6[%c0_10, %c0_11] : memref<16x192xf32, #tpu.memory_space<vmem>>, vector<16x192xf32>
      %c0_12 = arith.constant 0 : index
      %c0_13 = arith.constant 0 : index
      %15 = vector.load %arg5[%c0_12, %c0_13] : memref<16x192xf32, #tpu.memory_space<vmem>>, vector<16x192xf32>
      tpu.vector_store %arg5[%c0_12, %c0_13], %14 {strides = array<i32>} : memref<16x192xf32, #tpu.memory_space<vmem>>, vector<16x192xf32>,
    } else {
    }
    return
  }
  func.func @transform_0(%arg0: i32, %arg1: i32, %arg2: i32) -> (i32, i32) {
    %c0_i32 = arith.constant 0 : i32
    return %arg0, %arg2 : i32, i32
  }
  func.func @transform_1(%arg0: i32, %arg1: i32, %arg2: i32) -> (i32, i32) {
    %c0_i32 = arith.constant 0 : i32
    return %arg2, %arg1 : i32, i32
  }
  func.func @transform_2(%arg0: i32, %arg1: i32, %arg2: i32) -> (i32, i32) {
    %c0_i32 = arith.constant 0 : i32
    return %arg0, %arg1 : i32, i32
  }
}

</mosaic_0001>

<llo_original>
// kernel: tpu_custom_call.1
$region0: #{tpu_custom_call.1}
  #allocation0 [shape = 'u32[]', space=smem, size = 0x4, offset = 0x4, fixed_abs, tag = 'smem constant byte address 0x4 - core index']
  #allocation1 [shape = 'u32[144,128]{1,0:T(1,128)}', space=vmem, size = 0x12000, scoped, tag = 'internal scratch']
  #allocation2 [shape = 'f32[16,192]{1,0:T(8,128)}', space=vmem, size = 0x4000, scoped, tag = 'scratch operand']
  %s0 = inlined_call_operand.hbm [shape: f32[16,32], index: 0, kind: input, shape index: {}]
  %s1 = inlined_call_operand.hbm [shape: f32[32,192], index: 1, kind: input, shape index: {}]
  %s2 = inlined_call_operand.hbm [shape: f32[16,192], index: 2, kind: output, shape index: {}]
  %s3 = sld [smem:[#allocation0]]
  $region34: #{tpu_custom_call.1} parent=0
    _
  %s5 = ssub.s32 1, %s3
  %s6 = scalar_select 0, %s5, %s3
  $region1: #{tpu_custom_call.1} parent=0
    #allocation3 [shape = 'u8[8192]{0}', space=vmem, size = 0x2000, scoped, tag = 'input window, operand 0, single buffered']
    #allocation4 [shape = 's32[1]{0}', space=sflag, size = 0x4, scoped, tag = 'scoped memory for tpu_custom_call.1']
    #allocation5 [shape = 's32[1]{0}', space=sflag, size = 0x4, scoped, tag = 'scoped memory for tpu_custom_call.1']
    #allocation6 [shape = 'u8[32768]{0}', space=vmem, size = 0x8000, scoped, tag = 'input window, operand 1, single buffered']
    #allocation7 [shape = 's32[1]{0}', space=sflag, size = 0x4, scoped, tag = 'scoped memory for tpu_custom_call.1']
    #allocation8 [shape = 'u8[16384]{0}', space=vmem, size = 0x4000, scoped, tag = 'output window, operand 0, single buffered']
    %7 = vsyncpa [#allocation4], 0
    %8 = vsyncpa [#allocation7], 0
    %9 = vsyncpa [#allocation5], 0
    // Predicated region
    $region2: #{tpu_custom_call.1} parent=1 // pred_check
      _
    $region3: #{tpu_custom_call.1} parent=1 // pred_check_branch
      %11 = sbr.rel (0) target = $region5
    $region4: #{tpu_custom_call.1} parent=1 // pred_region
      %s13 = ssub.s32 256, 256
      %14 = vsyncadd [#allocation4], %s13
      %s15 = sshll.u32 [#allocation3], 4
      %s16 = int_to_ptr.vmem [resolvable:$true] %s15
      %21 = dma.hbm_to_vmem [thread:$0]  %s0, 256, %s16, [#allocation4], 128, 128, 8
    $region5: #{tpu_custom_call.1} parent=1 // pred_fallthru
      _
    // Predicated region
    $region6: #{tpu_custom_call.1} parent=1 // pred_check
      _
    $region7: #{tpu_custom_call.1} parent=1 // pred_check_branch
      %23 = sbr.rel (0) target = $region9
    $region8: #{tpu_custom_call.1} parent=1 // pred_region
      %s25 = ssub.s32 1024, 1024
      %26 = vsyncadd [#allocation7], %s25
      %s27 = sshll.u32 [#allocation6], 4
      %s28 = int_to_ptr.vmem [resolvable:$true] %s27
      %33 = dma.hbm_to_vmem [thread:$0]  %s1, 1024, %s28, [#allocation7], 256, 256, 16
    $region9: #{tpu_custom_call.1} parent=1 // pred_fallthru
      _
    // Predicated region
    $region10: #{tpu_custom_call.1} parent=1 // pred_check
      _
    $region11: #{tpu_custom_call.1} parent=1 // pred_check_branch
      %35 = sbr.rel (0) target = $region13
    $region12: #{tpu_custom_call.1} parent=1 // pred_region
      %36 = dma.done [#allocation4], 256
    $region13: #{tpu_custom_call.1} parent=1 // pred_fallthru
      _
    // Predicated region
    $region14: #{tpu_custom_call.1} parent=1 // pred_check
      _
    $region15: #{tpu_custom_call.1} parent=1 // pred_check_branch
      %38 = sbr.rel (0) target = $region17
    $region16: #{tpu_custom_call.1} parent=1 // pred_region
      %39 = dma.done [#allocation7], 1024
    $region17: #{tpu_custom_call.1} parent=1 // pred_fallthru
      _
    %p41 = scmp.eq.s32.totalorder 0, 0
    // Predicated region
    $region18: #{tpu_custom_call.1} parent=1 // pred_check
      %p42 = pneg %p41
    $region19: #{tpu_custom_call.1} parent=1 // pred_check_branch
      %44 = sbr.rel (%p42) target = $region21
    $region20: #{tpu_custom_call.1} parent=1 // pred_region
      %45 = vst [vmem:[#allocation2] sm:$0xff] 0.0
      %vm46 = vcmask 523264
      %47 = vst.msk [vmem:[#allocation2 + $0x8] sm:$0xff] %vm46, 0.0
      %48 = vst [vmem:[#allocation2 + $0x10] sm:$0xff] 0.0
      %49 = vst.msk [vmem:[#allocation2 + $0x18] sm:$0xff] %vm46, 0.0
    $region21: #{tpu_custom_call.1} parent=1 // pred_fallthru
      _
    %v50 = vld [vmem:[#allocation2] sm:$0xff]
    %v51 = vld [vmem:[#allocation2 + $0x8] sm:$0xff]
    %v52 = vld [vmem:[#allocation2 + $0x10] sm:$0xff]
    %v53 = vld [vmem:[#allocation2 + $0x18] sm:$0xff]
    %v54 = vld [vmem:[#allocation3] sm:$0xff]
    %v55 = vld [vmem:[#allocation3 + $0x8] sm:$0xff]
    %v56 = vpack.c.bf16 %v55, %v54
    %v57 = vld [vmem:[#allocation6] sm:$0xff]
    %v58 = vld [vmem:[#allocation6 + $0x8] sm:$0xff]
    %v59 = vld [vmem:[#allocation6 + $0x10] sm:$0xff]
    %v60 = vld [vmem:[#allocation6 + $0x18] sm:$0xff]
    %v61 = vld [vmem:[#allocation6 + $0x20] sm:$0xff]
    %v62 = vld [vmem:[#allocation6 + $0x28] sm:$0xff]
    %v63 = vld [vmem:[#allocation6 + $0x30] sm:$0xff]
    %v64 = vld [vmem:[#allocation6 + $0x38] sm:$0xff]
    %v65 = vpack.c.bf16 %v59, %v57
    %v66 = vpack.c.bf16 %v60, %v58
    %v67 = vpack.c.bf16 %v63, %v61
    %v68 = vpack.c.bf16 %v64, %v62
    %vm69 = vcmask 261120
    %v71 = vsel %vm69, %v56, 0
    %73 = vmatprep.subr.bf16.mxu0 0
    %74 = vmatpush1.bf16.msra.mxu0 0
    %75 = vmatprep.subr.bf16.mxu0 0
    %76 = vmatpush1.bf16.msra.mxu0 0
    %77 = vmatprep.subr.bf16.mxu0 0
    %78 = vmatpush1.bf16.msra.mxu0 0
    %79 = vmatprep.subr.bf16.mxu0 0
    %80 = vmatpush1.bf16.msra.mxu0 0
    %81 = vmatprep.subr.bf16.mxu0 0
    %82 = vmatpush1.bf16.msra.mxu0 0
    %83 = vmatprep.subr.bf16.mxu0 0
    %84 = vmatpush1.bf16.msra.mxu0 0
    %85 = vmatprep.subr.bf16.mxu0 %v68
    %86 = vmatpush1.bf16.msra.mxu0 %v67
    %87 = vmatprep.subr.bf16.mxu0 %v66
    %88 = vmatpush1.bf16.msra.mxu0 %v65
    %89 = vmatprep.subr.bf16.mxu0 0
    %90 = vmatpush2.bf16.msra.mxu0 0
    %91 = vmatprep.subr.bf16.mxu0 0
    %92 = vmatpush2.bf16.msra.mxu0 0
    %93 = vmatprep.subr.bf16.mxu0 0
    %94 = vmatpush2.bf16.msra.mxu0 0
    %95 = vmatprep.subr.bf16.mxu0 0
    %96 = vmatpush2.bf16.msra.mxu0 0
    %97 = vmatprep.subr.bf16.mxu0 0
    %98 = vmatpush2.bf16.msra.mxu0 0
    %99 = vmatprep.subr.bf16.mxu0 0
    %100 = vmatpush2.bf16.msra.mxu0 0
    %101 = vmatprep.subr.bf16.mxu0 0
    %102 = vmatpush2.bf16.msra.mxu0 0
    %103 = vmatprep.subr.bf16.mxu0 0
    %104 = vmatpush2.bf16.msra.mxu0 0
    %105 = vmatprep.mubr.bf16.mxu0 0
    %106 = vmatmul.mubr.bf16.gmra.mxu0 %v71
    %v107 = vpop.f32.mrf.mxu0
    %v108 = vadd.f32 0.0, %v107
    %v109 = vpop.f32.mrf.mxu0
    %v110 = vadd.f32 0.0, %v109
    %v111 = vpop.f32.mrf.mxu0
    %v112 = vadd.f32 0.0, %v111
    %v113 = vpop.f32.mrf.mxu0
    %v114 = vadd.f32 0.0, %v113
    %115 = vdwg.mxu0
    %v116 = vadd.f32 %v50, %v108
    %v117 = vadd.f32 %v51, %v110
    %v118 = vadd.f32 %v52, %v112
    %v119 = vadd.f32 %v53, %v114
    %120 = vst [vmem:[#allocation2] sm:$0xff] %v116
    %vm121 = vcmask 523264
    %122 = vst.msk [vmem:[#allocation2 + $0x8] sm:$0xff] %vm121, %v117
    %123 = vst [vmem:[#allocation2 + $0x10] sm:$0xff] %v118
    %124 = vst.msk [vmem:[#allocation2 + $0x18] sm:$0xff] %vm121, %v119
    // Predicated region
    $region22: #{tpu_custom_call.1} parent=1 // pred_check
      %p125 = pneg %p41
    $region23: #{tpu_custom_call.1} parent=1 // pred_check_branch
      %127 = sbr.rel (%p125) target = $region25
    $region24: #{tpu_custom_call.1} parent=1 // pred_region
      %v128 = vld [vmem:[#allocation2] sm:$0xff]
      %v129 = vld [vmem:[#allocation2 + $0x8] sm:$0xff]
      %v130 = vld [vmem:[#allocation2 + $0x10] sm:$0xff]
      %v131 = vld [vmem:[#allocation2 + $0x18] sm:$0xff]
      %132 = vst [vmem:[#allocation8] sm:$0xff] %v128
      %133 = vst.msk [vmem:[#allocation8 + $0x8] sm:$0xff] %vm121, %v129
      %134 = vst [vmem:[#allocation8 + $0x10] sm:$0xff] %v130
      %135 = vst.msk [vmem:[#allocation8 + $0x18] sm:$0xff] %vm121, %v131
    $region25: #{tpu_custom_call.1} parent=1 // pred_fallthru
      _
    // Predicated region
    $region26: #{tpu_custom_call.1} parent=1 // pred_check
      _
    $region27: #{tpu_custom_call.1} parent=1 // pred_check_branch
      %137 = sbr.rel (0) target = $region29
    $region28: #{tpu_custom_call.1} parent=1 // pred_region
      %s139 = ssub.s32 512, 512
      %140 = vsyncadd [#allocation5], %s139
      %s141 = sshll.u32 [#allocation8], 4
      %s142 = int_to_ptr.vmem [resolvable:$true] %s141
      %147 = dma.vmem_to_hbm [thread:$0]  %s142, 512, %s2, [#allocation5], 256, 256, 16
    $region29: #{tpu_custom_call.1} parent=1 // pred_fallthru
      _
    // Predicated region
    $region30: #{tpu_custom_call.1} parent=1 // pred_check
      _
    $region31: #{tpu_custom_call.1} parent=1 // pred_check_branch
      %149 = sbr.rel (0) target = $region33
    $region32: #{tpu_custom_call.1} parent=1 // pred_region
      %150 = dma.done [#allocation5], 512
    $region33: #{tpu_custom_call.1} parent=1 // pred_fallthru
      _
    %151 = vsyncpa [#allocation4], 1
    %152 = vsyncpa [#allocation7], 1
    %153 = vsyncpa [#allocation5], 1

</llo_original>
